<compile_context>
chip_gen: v5e
topology: v5e:2x2
jax: 0.10.0
libtpu: 0.0.40
codegen_flags: <defaults>
</compile_context>

<pallas_src>
import functools

import jax
import jax.numpy as jnp
from jax import lax
from jax.experimental import pallas as pl
from jax.experimental.pallas import tpu as pltpu


def _smooth_ce_kernel(logits_ref, labels_ref, out_ref, *, alpha, num_classes,
                      batch, tile_b):
    # logits_ref: (TB, C) float (any), labels_ref: (TB, 1) i32,
    # out_ref:    (1, 8, 128) f32 -- per-tile partial sum, broadcast lane-dense.
    x = logits_ref[...].astype(jnp.float32)          # upcast in vregs (bf16 ok)
    labels = labels_ref[...]                         # (TB, 1) i32
    TB, C = x.shape

    needs_row_mask = (batch % tile_b) != 0           # static Python decision
    if needs_row_mask:
        rows = pl.program_id(0) * tile_b + lax.broadcasted_iota(
            jnp.int32, (TB, 1), 0)
        valid = rows < batch                          # (TB, 1) bool
        # Zero padded rows *before* any arithmetic so garbage (even inf/nan
        # bit patterns) can never propagate.
        x = jnp.where(valid, x, 0.0)

    # ---- numerically stable log-softmax pieces (kept as shifted + lse) ----
    m = jnp.max(x, axis=-1, keepdims=True)                          # (TB, 1)
    shifted = x - m                                                 # (TB, C)
    lse = jnp.log(jnp.sum(jnp.exp(shifted), axis=-1, keepdims=True))  # (TB, 1)

    # ---- single masked pass to pull out shifted[label] (no one-hot target) --
    class_ids = lax.broadcasted_iota(jnp.int32, (TB, C), 1)
    shifted_at_label = jnp.sum(
        jnp.where(class_ids == labels, shifted, 0.0), axis=-1, keepdims=True)
    logp_at_label = shifted_at_label - lse                          # (TB, 1)

    # sum_j logp[i, j] = sum_j shifted[i, j] - C * lse[i]
    sum_logp = jnp.sum(shifted, axis=-1, keepdims=True) - C * lse   # (TB, 1)

    per_row = -((1.0 - alpha) * logp_at_label
                + (alpha / num_classes) * sum_logp)                 # (TB, 1)
    if needs_row_mask:
        per_row = jnp.where(valid, per_row, 0.0)

    tile_sum = jnp.sum(per_row)                                     # scalar f32
    # Lane-dense, unmasked store of the per-tile partial sum.
    out_ref[...] = jnp.broadcast_to(tile_sum, out_ref.shape)


def smooth_cross_entropy(logits, labels, alpha=0.5, tile_b=None):
    """Pallas TPU implementation of SmoothCrossEntropy.forward.

    logits: f32/bf16 [B, C], labels: int [B].  Returns f32 scalar mean loss.
    """
    B, C = logits.shape
    labels2d = labels.astype(jnp.int32).reshape(B, 1)
    itemsize = jnp.dtype(logits.dtype).itemsize

    # --- pick a batch tile: big enough to amortize per-step overhead, small
    # --- enough that a double-buffered block fits v7x's 64 MiB VMEM.
    if tile_b is None:
        budget_bytes = 4 * 1024 * 1024                 # per logits buffer
        tile_b = max(8, min(512, budget_bytes // max(1, C * itemsize)))
        tile_b = (tile_b // 8) * 8
    if tile_b >= B:
        tile_b = B                                     # single full block
    else:
        tile_b = max(8, (tile_b // 8) * 8)             # sublane-aligned
    num_tiles = pl.cdiv(B, tile_b)

    # Scoped VMEM: enough for double-buffered input + f32 intermediates,
    # capped below v7x's 64 MiB physical VMEM.
    vmem_limit = int(min(56 * 1024 * 1024,
                         max(32 * 1024 * 1024, 12 * tile_b * C * 4)))

    cost = pl.CostEstimate(
        flops=5 * B * C,
        transcendentals=B * C,
        bytes_accessed=B * C * itemsize + B * 4 + num_tiles * 8 * 128 * 4,
    )

    kernel = functools.partial(
        _smooth_ce_kernel, alpha=float(alpha), num_classes=C, batch=B,
        tile_b=tile_b)

    partials = pl.pallas_call(
        kernel,
        out_shape=jax.ShapeDtypeStruct((num_tiles, 8, 128), jnp.float32),
        grid_spec=pl.GridSpec(
            grid=(num_tiles,),
            in_specs=[
                pl.BlockSpec((tile_b, C), lambda i: (i, 0)),
                pl.BlockSpec((tile_b, 1), lambda i: (i, 0)),
            ],
            out_specs=pl.BlockSpec((1, 8, 128), lambda i: (i, 0, 0)),
        ),
        compiler_params=pltpu.CompilerParams(
            dimension_semantics=("parallel",),
            vmem_limit_bytes=vmem_limit,
        ),
        cost_estimate=cost,
    )(logits, labels2d)

    # Per-tile partials -> scalar mean (true B, not padded).
    return jnp.sum(partials[:, 0, 0]) / B


def _reference(logits, labels, alpha=0.5):
    # Pure-JAX reference mirroring the PyTorch module.
    C = logits.shape[-1]
    onehot = jax.nn.one_hot(labels, C, dtype=jnp.float32)
    target = onehot * (1.0 - alpha) + alpha / C
    logp = jax.nn.log_softmax(logits.astype(jnp.float32), axis=-1)
    return jnp.mean(-jnp.sum(target * logp, axis=-1))


if __name__ == "__main__":
    key = jax.random.PRNGKey(0)
    k1, k2, k3, k4 = jax.random.split(key, 4)

    # --- Test 1: small f32, single tile -------------------------------------
    B, C = 8, 32
    logits = jax.random.normal(k1, (B, C), dtype=jnp.float32) * 2.0
    labels = jax.random.randint(k2, (B,), 0, C, dtype=jnp.int32)
    loss = jax.block_until_ready(smooth_cross_entropy(logits, labels, 0.5))
    ref = _reference(logits, labels, 0.5)
    assert jnp.allclose(loss, ref, atol=2e-5, rtol=2e-5), (loss, ref)

    # --- Test 2: multi-tile, non-divisible batch (row-mask path) ------------
    B2, C2 = 13, 128
    logits2 = jax.random.normal(k3, (B2, C2), dtype=jnp.float32) * 3.0
    labels2 = jax.random.randint(k4, (B2,), 0, C2, dtype=jnp.int32)
    loss2 = jax.block_until_ready(
        smooth_cross_entropy(logits2, labels2, 0.5, tile_b=8))
    ref2 = _reference(logits2, labels2, 0.5)
    assert jnp.allclose(loss2, ref2, atol=2e-5, rtol=2e-5), (loss2, ref2)

    # --- Test 3: bf16 logits streamed, upcast inside the kernel -------------
    logits_bf16 = logits.astype(jnp.bfloat16)
    loss3 = jax.block_until_ready(smooth_cross_entropy(logits_bf16, labels, 0.5))
    ref3 = _reference(logits_bf16.astype(jnp.float32), labels, 0.5)
    assert jnp.allclose(loss3, ref3, atol=2e-5, rtol=2e-5), (loss3, ref3)

    print("KERNEL_OK")
</pallas_src>

<mosaic_0001>
module attributes {stable_mosaic.version = 11 : i64} {
  func.func @_smooth_ce_kernel(%arg0: i32, %arg1: memref<8x32xf32, #tpu.memory_space<vmem>>, %arg2: memref<8x1xi32, #tpu.memory_space<vmem>>, %arg3: memref<1x8x128xf32, #tpu.memory_space<vmem>>) attributes {dimension_semantics = [#tpu.dimension_semantics<parallel>], iteration_bounds = array<i64: 1>, scalar_prefetch = 0 : i64, scratch_operands = 0 : i64, tpu.core_type = #tpu.core_type<tc>, window_params = [{transform_indices = @transform_0, window_bounds = array<i64: 8, 32>}, {transform_indices = @transform_1, window_bounds = array<i64: 8, 1>}, {transform_indices = @transform_2, window_bounds = array<i64: 1, 8, 128>}]} {
    %c0 = arith.constant 0 : index
    %c0_0 = arith.constant 0 : index
    %0 = vector.load %arg1[%c0, %c0_0] : memref<8x32xf32, #tpu.memory_space<vmem>>, vector<8x32xf32>
    %c0_1 = arith.constant 0 : index
    %c0_2 = arith.constant 0 : index
    %1 = vector.load %arg2[%c0_1, %c0_2] : memref<8x1xi32, #tpu.memory_space<vmem>>, vector<8x1xi32>
    %cst = arith.constant dense<0xFF800000> : vector<8xf32>
    %2 = vector.multi_reduction <maximumf>, %0, %cst [1] : vector<8x32xf32> to vector<8xf32>
    %3 = vector.shape_cast %2 : vector<8xf32> to vector<8x1xf32>
    %4 = vector.broadcast %3 : vector<8x1xf32> to vector<8x32xf32>
    %5 = arith.subf %0, %4 : vector<8x32xf32>
    %6 = math.exp %5 : vector<8x32xf32>
    %cst_3 = arith.constant dense<0.000000e+00> : vector<8xf32>
    %7 = vector.multi_reduction <add>, %6, %cst_3 [1] : vector<8x32xf32> to vector<8xf32>
    %8 = vector.shape_cast %7 : vector<8xf32> to vector<8x1xf32>
    %9 = math.log %8 : vector<8x1xf32>
    %10 = tpu.iota {dimensions = array<i32: 1>} : vector<8x32xi32>
    %11 = vector.broadcast %1 : vector<8x1xi32> to vector<8x32xi32>
    %12 = arith.cmpi eq, %10, %11 : vector<8x32xi32>
    %cst_4 = arith.constant 0.000000e+00 : f32
    %13 = vector.broadcast %cst_4 : f32 to vector<8x32xf32>
    %14 = arith.select %12, %5, %13 : vector<8x32xi1>, vector<8x32xf32>
    %cst_5 = arith.constant dense<0.000000e+00> : vector<8xf32>
    %15 = vector.multi_reduction <add>, %14, %cst_5 [1] : vector<8x32xf32> to vector<8xf32>
    %16 = vector.shape_cast %15 : vector<8xf32> to vector<8x1xf32>
    %17 = arith.subf %16, %9 : vector<8x1xf32>
    %cst_6 = arith.constant dense<0.000000e+00> : vector<8xf32>
    %18 = vector.multi_reduction <add>, %5, %cst_6 [1] : vector<8x32xf32> to vector<8xf32>
    %19 = vector.shape_cast %18 : vector<8xf32> to vector<8x1xf32>
    %cst_7 = arith.constant 3.200000e+01 : f32
    %20 = vector.broadcast %cst_7 : f32 to vector<8x1xf32>
    %21 = arith.mulf %20, %9 : vector<8x1xf32>
    %22 = arith.subf %19, %21 : vector<8x1xf32>
    %cst_8 = arith.constant 5.000000e-01 : f32
    %23 = vector.broadcast %cst_8 : f32 to vector<8x1xf32>
    %24 = arith.mulf %23, %17 : vector<8x1xf32>
    %cst_9 = arith.constant 1.562500e-02 : f32
    %25 = vector.broadcast %cst_9 : f32 to vector<8x1xf32>
    %26 = arith.mulf %25, %22 : vector<8x1xf32>
    %27 = arith.addf %24, %26 : vector<8x1xf32>
    %cst_10 = arith.constant 0.000000e+00 : f32
    %28 = vector.broadcast %cst_10 : f32 to vector<8x1xf32>
    %29 = arith.subf %28, %27 : vector<8x1xf32>
    %30 = vector.shape_cast %29 : vector<8x1xf32> to vector<1x8x1xf32>
    %cst_11 = arith.constant dense<0.000000e+00> : vector<1xf32>
    %31 = vector.multi_reduction <add>, %30, %cst_11 [1, 2] : vector<1x8x1xf32> to vector<1xf32>
    %32 = vector.shape_cast %31 : vector<1xf32> to vector<1x1x1xf32>
    %33 = vector.extract %32[0, 0, 0] : f32 from vector<1x1x1xf32>
    %34 = vector.broadcast %33 : f32 to vector<1x8x128xf32>
    %c0_12 = arith.constant 0 : index
    %c0_13 = arith.constant 0 : index
    %c0_14 = arith.constant 0 : index
    %35 = vector.load %arg3[%c0_12, %c0_13, %c0_14] : memref<1x8x128xf32, #tpu.memory_space<vmem>>, vector<1x8x128xf32>
    tpu.vector_store %arg3[%c0_12, %c0_13, %c0_14], %34 {strides = array<i32>} : memref<1x8x128xf32, #tpu.memory_space<vmem>>, vector<1x8x128xf32>,
    return
  }
  func.func @transform_0(%arg0: i32) -> (i32, i32) {
    %c0_i32 = arith.constant 0 : i32
    %c0_i32_0 = arith.constant 0 : i32
    return %arg0, %c0_i32 : i32, i32
  }
  func.func @transform_1(%arg0: i32) -> (i32, i32) {
    %c0_i32 = arith.constant 0 : i32
    %c0_i32_0 = arith.constant 0 : i32
    return %arg0, %c0_i32 : i32, i32
  }
  func.func @transform_2(%arg0: i32) -> (i32, i32, i32) {
    %c0_i32 = arith.constant 0 : i32
    %c0_i32_0 = arith.constant 0 : i32
    %c0_i32_1 = arith.constant 0 : i32
    return %arg0, %c0_i32, %c0_i32_0 : i32, i32, i32
  }
}

</mosaic_0001>

<llo_original>
// kernel: tpu_custom_call.1
$region0: #{tpu_custom_call.1}
  #allocation0 [shape = 'u32[]', space=smem, size = 0x4, offset = 0x4, fixed_abs, tag = 'smem constant byte address 0x4 - core index']
  #allocation1 [shape = 'u32[72,128]{1,0:T(1,128)}', space=vmem, size = 0x9000, scoped, tag = 'internal scratch']
  %s0 = inlined_call_operand.vmem [shape: f32[8,32], index: 0, kind: input, shape index: {}]
  %s1 = inlined_call_operand.vmem [shape: s32[8,1], index: 1, kind: input, shape index: {}]
  %s2 = inlined_call_operand.hbm [shape: f32[1,8,128], index: 2, kind: output, shape index: {}]
  %s3 = sld [smem:[#allocation0]]
  $region18: #{tpu_custom_call.1} parent=0
    _
  %s5 = ssub.s32 1, %s3
  %s6 = scalar_select 0, %s5, %s3
  $region1: #{tpu_custom_call.1} parent=0
    #allocation2 [shape = 'u8[4096]{0}', space=vmem, size = 0x1000, scoped, tag = 'output window, operand 0, single buffered']
    #allocation3 [shape = 's32[1]{0}', space=sflag, size = 0x4, scoped, tag = 'scoped memory for tpu_custom_call.1']
    %7 = vsyncpa [#allocation3], 0
    // Predicated region
    $region2: #{tpu_custom_call.1} parent=1 // pred_check
      _
    $region3: #{tpu_custom_call.1} parent=1 // pred_check_branch
      %9 = sbr.rel (0) target = $region5
    $region4: #{tpu_custom_call.1} parent=1 // pred_region
      _
    $region5: #{tpu_custom_call.1} parent=1 // pred_fallthru
      _
    // Predicated region
    $region6: #{tpu_custom_call.1} parent=1 // pred_check
      _
    $region7: #{tpu_custom_call.1} parent=1 // pred_check_branch
      %11 = sbr.rel (0) target = $region9
    $region8: #{tpu_custom_call.1} parent=1 // pred_region
      _
    $region9: #{tpu_custom_call.1} parent=1 // pred_fallthru
      _
    %v12 = vld [vmem:[%s0] sm:$0xff]
    %v13 = vld [vmem:[%s1] sm:$0xff]
    %vm14 = vcmask 261120
    %v15 = vsel %vm14, %v12, -inf
    %16 = vmax.xlane.f32.xlu0 %v15
    %v17 = vpop.xlane.xlu0 %16
    %v18 = vsub.f32 %v12, %v17
    %v19 = vmul.f32 %v18, 1.442695
    %v20 = vpow.pop %v19
    %v21 = vsel %vm14, %v20, 0.0
    %22 = vadd.xlane.f32.xlu0 %v21
    %v23 = vpop.xlane.xlu0 %22
    %v24 = vlog2.pop %v23
    %v25 = vmul.f32 %v24, 0.6931472
    %v26 = vlaneseq
    %v27 = vand.u32 %v26, 127
    %28 = vset.pattern.permute.xlu0 0
    %29 = vperm.xlu0 %28, %v13
    %v30 = vpop.permute.xlu0 %29
    %vm31 = vcmp.eq.s32.totalorder %v27, %v30
    %v32 = vsel %vm31, %v18, 0.0
    %v33 = vsel %vm14, %v32, 0.0
    %34 = vadd.xlane.f32.xlu0 %v33
    %v35 = vpop.xlane.xlu0 %34
    %v36 = vsub.f32 %v35, %v25
    %v37 = vsel %vm14, %v18, 0.0
    %38 = vadd.xlane.f32.xlu0 %v37
    %v39 = vpop.xlane.xlu0 %38
    %v40 = vmul.f32 %v25, 32.0
    %v41 = vsub.f32 %v39, %v40
    %v42 = vmul.f32 %v36, 0.5
    %v43 = vmul.f32 %v41, 0.015625
    %v44 = vadd.f32 %v42, %v43
    %v45 = vsub.f32 0.0, %v44
    %vm46 = vcmask 7168
    %v47 = vsel %vm46, %v45, 0.0
    %48 = vadd.xlane.f32.xlu0 %v47
    %v49 = vpop.xlane.xlu0 %48
    %v50 = vrot.slane %v49, 4
    %v51 = vadd.f32 %v49, %v50
    %v52 = vrot.slane %v51, 2
    %v53 = vadd.f32 %v51, %v52
    %v54 = vrot.slane %v53, 1
    %v55 = vadd.f32 %v53, %v54
    %s56 = vtos %v55
    %v57 = vstv %s56
    %58 = vst [vmem:[#allocation2] sm:$0xff] %v57
    // Predicated region
    $region10: #{tpu_custom_call.1} parent=1 // pred_check
      _
    $region11: #{tpu_custom_call.1} parent=1 // pred_check_branch
      %60 = sbr.rel (0) target = $region13
    $region12: #{tpu_custom_call.1} parent=1 // pred_region
      %62 = vsyncadd [#allocation3], 0
      %s64 = sshll.u32 [#allocation2], 4
      %s65 = int_to_ptr.vmem [resolvable:$true] %s64
      %s66 = sshll.u32 %s2, 4
      %s67 = int_to_ptr.hbm [resolvable:$true] %s66
      %69 = dma.vmem_to_hbm [thread:$0]  %s65, 128, %s67, [#allocation3]
    $region13: #{tpu_custom_call.1} parent=1 // pred_fallthru
      _
    // Predicated region
    $region14: #{tpu_custom_call.1} parent=1 // pred_check
      _
    $region15: #{tpu_custom_call.1} parent=1 // pred_check_branch
      %71 = sbr.rel (0) target = $region17
    $region16: #{tpu_custom_call.1} parent=1 // pred_region
      %73 = dma.done [#allocation3], 128
    $region17: #{tpu_custom_call.1} parent=1 // pred_fallthru
      _
    %74 = vsyncpa [#allocation3], 1

</llo_original>
